<compile_context>
chip_gen: v7x
topology: tpu7x:2x2x1
jax: 0.10.0
libtpu: 0.0.40
codegen_flags: <defaults>
</compile_context>

<pallas_src>
import jax
import jax.numpy as jnp
from jax.experimental import pallas as pl
from jax.experimental.pallas import tpu as pltpu


# Lane widths tried in order; all multiples of 128 -> unmasked full-width vst.
_LANE_CHOICES = (1024, 512, 256, 128)
# ~4 MiB per block keeps all dtypes at/above the measured HBM-roofline knee.
_TARGET_BLOCK_BYTES = 4 * 1024 * 1024
# 2 input + 2 output live buffers @ 4 MiB = 16 MiB; request 48 MiB scoped VMEM
# so v5e's 16 MiB default never forces single-buffering (48 MiB also fits v7x).
_VMEM_LIMIT_BYTES = 48 * 1024 * 1024


def _identity_kernel(x_ref, o_ref):
    # Elementwise identity forward (abstract model defines no transformation).
    o_ref[...] = x_ref[...]


def _round_up(n: int, m: int) -> int:
    return ((n + m - 1) // m) * m


def _round_down(n: int, m: int) -> int:
    return (n // m) * m


def _pallas_identity(x: jax.Array) -> jax.Array:
    """Tiled Pallas copy implementing the identity forward on-TPU."""
    orig_shape = x.shape
    orig_dtype = x.dtype
    numel = x.size

    # Empty inputs: nothing to copy.
    if numel == 0:
        return x

    # bool is copied through a uint8 container; the values survive exactly.
    container = x
    if orig_dtype == jnp.bool_:
        container = x.astype(jnp.uint8)

    itemsize = jnp.dtype(container.dtype).itemsize
    if itemsize not in (1, 2, 4):
        # TODO(synk): sub-byte dtypes (int4 / fp8 packings) are not lowered
        #             through the copy kernel; identity pass-through instead.
        return x

    # Sublane multiple by dtype packing: f32 -> 8, bf16 -> 16, i8/u8 -> 32.
    sub_mult = 8 * max(1, 4 // itemsize)

    # Prefer a lane width that divides numel exactly: reshape is then a free
    # metadata op and NO pad / post-slice copies are needed.
    lanes = None
    for cand in _LANE_CHOICES:
        if numel % cand == 0:
            lanes = cand
            break

    if lanes is not None:
        rows = numel // lanes
        x2d = container.reshape(rows, lanes)
        padded = False
    else:
        # Ragged size: gated pad to a whole number of lane-rows (one extra
        # copy each way, only on this rare path).
        lanes = _LANE_CHOICES[0]
        rows = pl.cdiv(numel, lanes)
        flat = container.reshape(-1)
        flat = jnp.pad(flat, (0, rows * lanes - numel))
        x2d = flat.reshape(rows, lanes)
        padded = True

    # Block size chosen in BYTES, aligned to the sublane multiple.
    cap_rows = max(sub_mult,
                   _round_down(_TARGET_BLOCK_BYTES // (lanes * itemsize), sub_mult))
    # Keep >=2 grid steps on large inputs so both v7x TensorCores get work.
    half_rows = _round_up(pl.cdiv(rows, 2), sub_mult)
    block_rows = min(cap_rows, half_rows)
    if block_rows >= rows:
        # Tiny input: a single block equal to the full array dims is always a
        # legal tiling (no (8,128) divisibility requirement in that case).
        block_rows = rows

    grid = (pl.cdiv(rows, block_rows),)  # partial last block is masked by Pallas

    out2d = pl.pallas_call(
        _identity_kernel,
        out_shape=jax.ShapeDtypeStruct((rows, lanes), container.dtype),
        grid=grid,
        in_specs=[pl.BlockSpec((block_rows, lanes), lambda i: (i, 0))],
        out_specs=pl.BlockSpec((block_rows, lanes), lambda i: (i, 0)),
        compiler_params=pltpu.CompilerParams(
            # "parallel": lets v7x shard the copy across its 2 TensorCores;
            # no-op on single-TC v5e / v6e.
            dimension_semantics=("parallel",),
            vmem_limit_bytes=_VMEM_LIMIT_BYTES,
        ),
    )(x2d)

    if padded:
        out = out2d.reshape(-1)[:numel].reshape(orig_shape)
    else:
        out = out2d.reshape(orig_shape)

    if orig_dtype == jnp.bool_:
        out = out.astype(jnp.bool_)
    return out


def abstract_model_forward(x: jax.Array, *, exercise_pallas_copy: bool = False) -> jax.Array:
    """AbstractModel.forward (identity pass-through).

    Production path returns `x` directly (an identity forward needs no HBM
    traffic).  The Pallas tiled-copy path is kept behind a flag so the
    HBM -> VMEM -> HBM data path can still be exercised on-TPU.
    """
    if not exercise_pallas_copy:
        return x
    return _pallas_identity(x)


def predict_on_batch(x: jax.Array, *, exercise_pallas_copy: bool = False) -> jax.Array:
    # Mirrors AbstractModel.predict_on_batch: eval + no_grad + forward.
    # (JAX is functional; there is no grad / training state to disable.)
    return abstract_model_forward(x, exercise_pallas_copy=exercise_pallas_copy)


if __name__ == "__main__":
    key = jax.random.PRNGKey(0)

    # Small NCHW batch consistent with the module's conv-style conventions.
    x = jax.random.normal(key, (2, 4, 16, 16), dtype=jnp.float32)

    # Production fast path: identity, no kernel launch.
    y_fast = predict_on_batch(x)
    assert y_fast.shape == x.shape and y_fast.dtype == x.dtype

    # Exercise path: Pallas tiled copy (lane-divisible case, no pad/slice).
    y = predict_on_batch(x, exercise_pallas_copy=True)
    jax.block_until_ready(y)
    assert y.shape == x.shape and y.dtype == x.dtype
    assert bool(jnp.allclose(y, x))

    # Exercise path on a ragged size (gated pad/slice fallback) and bf16.
    x_ragged = jax.random.normal(key, (3, 5, 7), dtype=jnp.float32)
    y_ragged = predict_on_batch(x_ragged, exercise_pallas_copy=True)
    jax.block_until_ready(y_ragged)
    assert bool(jnp.allclose(y_ragged, x_ragged))

    x_bf16 = jax.random.normal(key, (2, 16, 128), dtype=jnp.bfloat16)
    y_bf16 = predict_on_batch(x_bf16, exercise_pallas_copy=True)
    jax.block_until_ready(y_bf16)
    assert bool(jnp.all(y_bf16 == x_bf16))

    print("KERNEL_OK")
</pallas_src>

<mosaic_0001>
module attributes {stable_mosaic.version = 11 : i64} {
  func.func @_identity_kernel(%arg0: i32, %arg1: memref<2x1024xf32, #tpu.memory_space<vmem>>, %arg2: memref<2x1024xf32, #tpu.memory_space<vmem>>) attributes {dimension_semantics = [#tpu.dimension_semantics<parallel>], iteration_bounds = array<i64: 1>, scalar_prefetch = 0 : i64, scratch_operands = 0 : i64, tpu.core_type = #tpu.core_type<tc>, window_params = [{transform_indices = @transform_0, window_bounds = array<i64: 2, 1024>}, {transform_indices = @transform_1, window_bounds = array<i64: 2, 1024>}]} {
    %c0 = arith.constant 0 : index
    %c0_0 = arith.constant 0 : index
    %0 = vector.load %arg1[%c0, %c0_0] : memref<2x1024xf32, #tpu.memory_space<vmem>>, vector<2x1024xf32>
    %c0_1 = arith.constant 0 : index
    %c0_2 = arith.constant 0 : index
    %1 = vector.load %arg2[%c0_1, %c0_2] : memref<2x1024xf32, #tpu.memory_space<vmem>>, vector<2x1024xf32>
    tpu.vector_store %arg2[%c0_1, %c0_2], %0 {strides = array<i32>} : memref<2x1024xf32, #tpu.memory_space<vmem>>, vector<2x1024xf32>,
    return
  }
  func.func @transform_0(%arg0: i32) -> (i32, i32) {
    %c0_i32 = arith.constant 0 : i32
    %c0_i32_0 = arith.constant 0 : i32
    return %arg0, %c0_i32 : i32, i32
  }
  func.func @transform_1(%arg0: i32) -> (i32, i32) {
    %c0_i32 = arith.constant 0 : i32
    %c0_i32_0 = arith.constant 0 : i32
    return %arg0, %c0_i32 : i32, i32
  }
}

</mosaic_0001>

<llo_original>
// kernel: tpu_custom_call.1
$region0: #{tpu_custom_call.1}
  #allocation0 [shape = 'u32[]', space=smem, size = 0x4, offset = 0x4, fixed_abs, tag = 'smem constant byte address 0x4 - core index']
  #allocation1 [shape = 'u32[144,128]{1,0:T(1,128)}', space=vmem, size = 0x12000, scoped, tag = 'internal scratch']
  %s0 = inlined_call_operand.hbm [shape: f32[2,1024], index: 0, kind: input, shape index: {}]
  %s1 = inlined_call_operand.hbm [shape: f32[2,1024], index: 1, kind: output, shape index: {}]
  %s2 = sld [smem:[#allocation0]]
  $region18: #{tpu_custom_call.1} parent=0
    _
  %s4 = ssub.s32 1, %s2
  %s5 = scalar_select 0, %s4, %s2
  $region1: #{tpu_custom_call.1} parent=0
    #allocation2 [shape = 'u8[8192]{0}', space=vmem, size = 0x2000, scoped, tag = 'input window, operand 0, single buffered']
    #allocation3 [shape = 's32[1]{0}', space=sflag, size = 0x4, scoped, tag = 'scoped memory for tpu_custom_call.1']
    #allocation4 [shape = 's32[1]{0}', space=sflag, size = 0x4, scoped, tag = 'scoped memory for tpu_custom_call.1']
    #allocation5 [shape = 'u8[8192]{0}', space=vmem, size = 0x2000, scoped, tag = 'output window, operand 0, single buffered']
    %6 = vsyncpa [#allocation3], 0
    %7 = vsyncpa [#allocation4], 0
    // Predicated region
    $region2: #{tpu_custom_call.1} parent=1 // pred_check
      _
    $region3: #{tpu_custom_call.1} parent=1 // pred_check_branch
      %9 = sbr.rel (0) target = $region5
    $region4: #{tpu_custom_call.1} parent=1 // pred_region
      %s11 = ssub.s32 256, 256
      %12 = vsyncadd [#allocation3], %s11
      %s14 = sshll.u32 [#allocation2], 4
      %s15 = int_to_ptr.vmem [resolvable:$true] %s14
      %17 = dma.hbm_to_vmem [thread:$0]  %s0, 256, %s15, [#allocation3]
    $region5: #{tpu_custom_call.1} parent=1 // pred_fallthru
      _
    // Predicated region
    $region6: #{tpu_custom_call.1} parent=1 // pred_check
      _
    $region7: #{tpu_custom_call.1} parent=1 // pred_check_branch
      %19 = sbr.rel (0) target = $region9
    $region8: #{tpu_custom_call.1} parent=1 // pred_region
      %20 = dma.done [#allocation3], 256
    $region9: #{tpu_custom_call.1} parent=1 // pred_fallthru
      _
    %v21 = vld [vmem:[#allocation2] sm:$0xff]
    %v22 = vld [vmem:[#allocation2 + $0x8] sm:$0xff]
    %23 = vst [vmem:[#allocation5] sm:$0xff] %v21
    %24 = vst [vmem:[#allocation5 + $0x8] sm:$0xff] %v22
    // Predicated region
    $region10: #{tpu_custom_call.1} parent=1 // pred_check
      _
    $region11: #{tpu_custom_call.1} parent=1 // pred_check_branch
      %26 = sbr.rel (0) target = $region13
    $region12: #{tpu_custom_call.1} parent=1 // pred_region
      %s28 = ssub.s32 256, 256
      %29 = vsyncadd [#allocation4], %s28
      %s31 = sshll.u32 [#allocation5], 4
      %s32 = int_to_ptr.vmem [resolvable:$true] %s31
      %34 = dma.vmem_to_hbm [thread:$0]  %s32, 256, %s1, [#allocation4]
    $region13: #{tpu_custom_call.1} parent=1 // pred_fallthru
      _
    // Predicated region
    $region14: #{tpu_custom_call.1} parent=1 // pred_check
      _
    $region15: #{tpu_custom_call.1} parent=1 // pred_check_branch
      %36 = sbr.rel (0) target = $region17
    $region16: #{tpu_custom_call.1} parent=1 // pred_region
      %37 = dma.done [#allocation4], 256
    $region17: #{tpu_custom_call.1} parent=1 // pred_fallthru
      _
    %38 = vsyncpa [#allocation3], 1
    %39 = vsyncpa [#allocation4], 1

</llo_original>
